<compile_context>
chip_gen: v6e
topology: v6e:2x2x1
jax: 0.10.0
libtpu: 0.0.40
codegen_flags: <defaults>
</compile_context>

<pallas_src>
import jax
import jax.numpy as jnp
from jax import lax
from jax.experimental import pallas as pl
from jax.experimental.pallas import tpu as pltpu


def _round_up(x, m):
    return (x + m - 1) // m * m


def recsys_gather_kernel(uidx_ref, bidx_ref,        # scalar-prefetch index vectors (SMEM)
                         u_hbm, b_hbm,              # embedding tables (HBM via pl.ANY)
                         wu_ref, wb_ref,            # (1, emb) Linear weight halves (VMEM)
                         out_ref,                   # (tile_b, 1) output block
                         ubuf, bbuf, sem):          # VMEM gather buffers + DMA sems
    t = pl.program_id(0)
    tb = ubuf.shape[0]
    base = t * tb

    # Issue all 2*tile_b row-gather DMAs for this batch tile; they overlap each other.
    @pl.loop(0, tb)
    def _issue(j):
        pltpu.make_async_copy(u_hbm.at[uidx_ref[base + j]], ubuf.at[j], sem.at[0]).start()
        pltpu.make_async_copy(b_hbm.at[bidx_ref[base + j]], bbuf.at[j], sem.at[1]).start()

    # Wait for all of them (each wait consumes exactly one row-copy's completion).
    @pl.loop(0, tb)
    def _wait(j):
        pltpu.make_async_copy(u_hbm.at[0], ubuf.at[j], sem.at[0]).wait()
        pltpu.make_async_copy(b_hbm.at[0], bbuf.at[j], sem.at[1]).wait()

    # Fold Linear(64->1) over the gathered rows only:
    #   out[j] = sum(u_row[j] * w[:32]) + sum(b_row[j] * w[32:])      (bias added wrapper-side)
    su = jnp.sum(ubuf[...].astype(jnp.float32) * wu_ref[...], axis=1, keepdims=True)
    sb = jnp.sum(bbuf[...].astype(jnp.float32) * wb_ref[...], axis=1, keepdims=True)
    out_ref[...] = (su + sb).astype(out_ref.dtype)


def recsys_forward(users, books, u_tab, b_tab, w, b, *, tile_b=128):
    """users, books: (B,) int; u_tab: (n_users, 32); b_tab: (n_books, 32);
    w: (1, 64) Linear weight (concat order [user, book]); b: (1,) Linear bias.
    Returns (B, 1) float32, matching the PyTorch module."""
    n_users, emb = u_tab.shape
    n_books, emb_b = b_tab.shape
    assert emb == emb_b
    B = int(users.shape[0])
    assert w.shape == (1, 2 * emb)

    # Split the Linear weight into the user / book halves (zero-cost, done per call).
    w = w.astype(jnp.float32)
    w_u = w[:, :emb]
    w_b = w[:, emb:]

    # Clamp indices (nn.Embedding would raise on OOB ids; we clamp -- documented).
    u_idx = jnp.clip(users.astype(jnp.int32), 0, n_users - 1)
    b_idx = jnp.clip(books.astype(jnp.int32), 0, n_books - 1)

    # Batch tiling: tile_b multiple of 8 (sublane); pad batch to a whole number of tiles.
    # For v7x pick tile_b <= B/2 at real batch sizes so both TensorCores get a tile.
    tile_b = max(8, _round_up(min(tile_b, max(B, 1)), 8))
    b_pad = _round_up(max(B, 1), tile_b)
    u_idx = jnp.pad(u_idx, (0, b_pad - B))      # padding gathers row 0 (harmless, sliced off)
    b_idx = jnp.pad(b_idx, (0, b_pad - B))

    grid = (b_pad // tile_b,)

    out = pl.pallas_call(
        recsys_gather_kernel,
        out_shape=jax.ShapeDtypeStruct((b_pad, 1), jnp.float32),
        grid_spec=pltpu.PrefetchScalarGridSpec(
            num_scalar_prefetch=2,
            grid=grid,
            in_specs=[
                pl.BlockSpec(memory_space=pl.ANY),                 # user table stays in HBM
                pl.BlockSpec(memory_space=pl.ANY),                 # book table stays in HBM
                pl.BlockSpec((1, emb), lambda i, u, b: (0, 0)),    # w_u (VMEM resident)
                pl.BlockSpec((1, emb), lambda i, u, b: (0, 0)),    # w_b (VMEM resident)
            ],
            out_specs=pl.BlockSpec((tile_b, 1), lambda i, u, b: (i, 0)),
            scratch_shapes=[
                pltpu.VMEM((tile_b, emb), u_tab.dtype),
                pltpu.VMEM((tile_b, emb), b_tab.dtype),
                pltpu.SemaphoreType.DMA((2,)),
            ]),
        compiler_params=pltpu.CompilerParams(
            dimension_semantics=("parallel",)),
    )(u_idx, b_idx, u_tab, b_tab, w_u, w_b)

    return out[:B] + jnp.asarray(b, jnp.float32).reshape(1, 1)


def recsys_reference(users, books, u_tab, b_tab, w, b):
    cat = jnp.concatenate([u_tab[users], b_tab[books]], axis=1)          # (B, 64)
    return jnp.dot(cat, w.T, precision=lax.Precision.HIGHEST) + b        # (B, 1)


if __name__ == "__main__":
    n_users, n_books, B, emb = 50, 40, 20, 32
    key = jax.random.PRNGKey(0)
    k1, k2, k3, k4, k5, k6 = jax.random.split(key, 6)

    # nn.Embedding default init: N(0, 1); nn.Linear: U(-1/sqrt(64), 1/sqrt(64)).
    u_tab = jax.random.normal(k1, (n_users, emb), dtype=jnp.float32)
    b_tab = jax.random.normal(k2, (n_books, emb), dtype=jnp.float32)
    bound = 1.0 / jnp.sqrt(64.0)
    w = jax.random.uniform(k3, (1, 2 * emb), minval=-bound, maxval=bound,
                           dtype=jnp.float32)
    b = jax.random.uniform(k4, (1,), minval=-bound, maxval=bound,
                           dtype=jnp.float32)

    users = jax.random.randint(k5, (B,), 0, n_users, dtype=jnp.int32)
    books = jax.random.randint(k6, (B,), 0, n_books, dtype=jnp.int32)

    # tile_b=8 -> 3 batch tiles: exercises multi-tile grid and batch padding.
    out = recsys_forward(users, books, u_tab, b_tab, w, b, tile_b=8)
    out = jax.block_until_ready(out)

    ref = recsys_reference(users, books, u_tab, b_tab, w, b)
    assert out.shape == (B, 1), out.shape
    assert jnp.allclose(out, ref, atol=1e-5, rtol=1e-5), (out, ref)

    print("KERNEL_OK")
</pallas_src>

<mosaic_0001>
module attributes {stable_mosaic.version = 11 : i64} {
  func.func @recsys_gather_kernel(%arg0: i32, %arg1: memref<24xi32, #tpu.memory_space<smem>>, %arg2: memref<24xi32, #tpu.memory_space<smem>>, %arg3: memref<50x32xf32, #tpu.memory_space<any>>, %arg4: memref<40x32xf32, #tpu.memory_space<any>>, %arg5: memref<1x32xf32, #tpu.memory_space<vmem>>, %arg6: memref<1x32xf32, #tpu.memory_space<vmem>>, %arg7: memref<8x1xf32, #tpu.memory_space<vmem>>, %arg8: memref<8x32xf32, #tpu.memory_space<vmem>>, %arg9: memref<8x32xf32, #tpu.memory_space<vmem>>, %arg10: memref<2x!tpu.dma_semaphore, #tpu.memory_space<semaphore_mem>>) attributes {dimension_semantics = [#tpu.dimension_semantics<parallel>], iteration_bounds = array<i64: 3>, scalar_prefetch = 2 : i64, scratch_operands = 3 : i64, tpu.core_type = #tpu.core_type<tc>, window_params = [{}, {}, {pipeline_mode = #tpu.pipeline_mode<synchronous>, transform_indices = @transform_2, window_bounds = array<i64: 1, 32>}, {pipeline_mode = #tpu.pipeline_mode<synchronous>, transform_indices = @transform_3, window_bounds = array<i64: 1, 32>}, {transform_indices = @transform_4, window_bounds = array<i64: 8, 1>}]} {
    %c8_i32 = arith.constant 8 : i32
    %0 = arith.muli %arg0, %c8_i32 : i32
    %c0_i32 = arith.constant 0 : i32
    %c8_i32_0 = arith.constant 8 : i32
    %1 = arith.addi %c0_i32, %c8_i32_0 : i32
    %c1_i32 = arith.constant 1 : i32
    scf.for %arg11 = %c0_i32 to %1 step %c1_i32  : i32 {
      %c1_i32_16 = arith.constant 1 : i32
      %17 = arith.muli %arg11, %c1_i32_16 : i32
      %c0_i32_17 = arith.constant 0 : i32
      %18 = arith.addi %c0_i32_17, %17 : i32
      %19 = arith.addi %0, %18 : i32
      %20 = arith.index_cast %19 : i32 to index
      %21 = memref.load %arg1[%20] : memref<24xi32, #tpu.memory_space<smem>>
      %c0_i32_18 = arith.constant 0 : i32
      %c0_i32_19 = arith.constant 0 : i32
      %22 = tpu.memref_slice %arg3[%21, %c0_i32_19] : memref<50x32xf32, #tpu.memory_space<any>> -> memref<1x32xf32, #tpu.memory_space<any>>
      %23 = tpu.memref_squeeze %22 : memref<1x32xf32, #tpu.memory_space<any>> -> memref<32xf32, #tpu.memory_space<any>>
      %c0_i32_20 = arith.constant 0 : i32
      %24 = tpu.memref_slice %arg8[%18, %c0_i32_20] : memref<8x32xf32, #tpu.memory_space<vmem>> -> memref<1x32xf32, #tpu.memory_space<vmem>>
      %25 = tpu.memref_squeeze %24 : memref<1x32xf32, #tpu.memory_space<vmem>> -> memref<32xf32, #tpu.memory_space<vmem>>
      %26 = tpu.memref_slice %arg10[%c0_i32_18] : memref<2x!tpu.dma_semaphore, #tpu.memory_space<semaphore_mem>> -> memref<1x!tpu.dma_semaphore, #tpu.memory_space<semaphore_mem>>
      %27 = tpu.memref_squeeze %26 : memref<1x!tpu.dma_semaphore, #tpu.memory_space<semaphore_mem>> -> memref<!tpu.dma_semaphore, #tpu.memory_space<semaphore_mem>>
      tpu.enqueue_dma source(%23 : memref<32xf32, #tpu.memory_space<any>>) target(%25 : memref<32xf32, #tpu.memory_space<vmem>>) target_semaphore(%27 : memref<!tpu.dma_semaphore, #tpu.memory_space<semaphore_mem>>)
      %28 = arith.addi %0, %18 : i32
      %29 = arith.index_cast %28 : i32 to index
      %30 = memref.load %arg2[%29] : memref<24xi32, #tpu.memory_space<smem>>
      %c1_i32_21 = arith.constant 1 : i32
      %c0_i32_22 = arith.constant 0 : i32
      %31 = tpu.memref_slice %arg4[%30, %c0_i32_22] : memref<40x32xf32, #tpu.memory_space<any>> -> memref<1x32xf32, #tpu.memory_space<any>>
      %32 = tpu.memref_squeeze %31 : memref<1x32xf32, #tpu.memory_space<any>> -> memref<32xf32, #tpu.memory_space<any>>
      %c0_i32_23 = arith.constant 0 : i32
      %33 = tpu.memref_slice %arg9[%18, %c0_i32_23] : memref<8x32xf32, #tpu.memory_space<vmem>> -> memref<1x32xf32, #tpu.memory_space<vmem>>
      %34 = tpu.memref_squeeze %33 : memref<1x32xf32, #tpu.memory_space<vmem>> -> memref<32xf32, #tpu.memory_space<vmem>>
      %35 = tpu.memref_slice %arg10[%c1_i32_21] : memref<2x!tpu.dma_semaphore, #tpu.memory_space<semaphore_mem>> -> memref<1x!tpu.dma_semaphore, #tpu.memory_space<semaphore_mem>>
      %36 = tpu.memref_squeeze %35 : memref<1x!tpu.dma_semaphore, #tpu.memory_space<semaphore_mem>> -> memref<!tpu.dma_semaphore, #tpu.memory_space<semaphore_mem>>
      tpu.enqueue_dma source(%32 : memref<32xf32, #tpu.memory_space<any>>) target(%34 : memref<32xf32, #tpu.memory_space<vmem>>) target_semaphore(%36 : memref<!tpu.dma_semaphore, #tpu.memory_space<semaphore_mem>>)
    }
    %c8_i32_1 = arith.constant 8 : i32
    %c0_i32_2 = arith.constant 0 : i32
    %c8_i32_3 = arith.constant 8 : i32
    %2 = arith.addi %c0_i32_2, %c8_i32_3 : i32
    %c1_i32_4 = arith.constant 1 : i32
    scf.for %arg11 = %c0_i32_2 to %2 step %c1_i32_4  : i32 {
      %c1_i32_16 = arith.constant 1 : i32
      %17 = arith.muli %arg11, %c1_i32_16 : i32
      %c0_i32_17 = arith.constant 0 : i32
      %18 = arith.addi %c0_i32_17, %17 : i32
      %c0_i32_18 = arith.constant 0 : i32
      %c0_i32_19 = arith.constant 0 : i32
      %c0_i32_20 = arith.constant 0 : i32
      %19 = tpu.memref_slice %arg3[%c0_i32_18, %c0_i32_20] : memref<50x32xf32, #tpu.memory_space<any>> -> memref<1x32xf32, #tpu.memory_space<any>>
      %20 = tpu.memref_squeeze %19 : memref<1x32xf32, #tpu.memory_space<any>> -> memref<32xf32, #tpu.memory_space<any>>
      %c0_i32_21 = arith.constant 0 : i32
      %21 = tpu.memref_slice %arg8[%18, %c0_i32_21] : memref<8x32xf32, #tpu.memory_space<vmem>> -> memref<1x32xf32, #tpu.memory_space<vmem>>
      %22 = tpu.memref_squeeze %21 : memref<1x32xf32, #tpu.memory_space<vmem>> -> memref<32xf32, #tpu.memory_space<vmem>>
      %23 = tpu.memref_slice %arg10[%c0_i32_19] : memref<2x!tpu.dma_semaphore, #tpu.memory_space<semaphore_mem>> -> memref<1x!tpu.dma_semaphore, #tpu.memory_space<semaphore_mem>>
      %24 = tpu.memref_squeeze %23 : memref<1x!tpu.dma_semaphore, #tpu.memory_space<semaphore_mem>> -> memref<!tpu.dma_semaphore, #tpu.memory_space<semaphore_mem>>
      tpu.wait_dma2 semaphore(%24 : memref<!tpu.dma_semaphore, #tpu.memory_space<semaphore_mem>>) src(%20 : memref<32xf32, #tpu.memory_space<any>>) dst(%22 : memref<32xf32, #tpu.memory_space<vmem>>)
      %c0_i32_22 = arith.constant 0 : i32
      %c1_i32_23 = arith.constant 1 : i32
      %c0_i32_24 = arith.constant 0 : i32
      %25 = tpu.memref_slice %arg4[%c0_i32_22, %c0_i32_24] : memref<40x32xf32, #tpu.memory_space<any>> -> memref<1x32xf32, #tpu.memory_space<any>>
      %26 = tpu.memref_squeeze %25 : memref<1x32xf32, #tpu.memory_space<any>> -> memref<32xf32, #tpu.memory_space<any>>
      %c0_i32_25 = arith.constant 0 : i32
      %27 = tpu.memref_slice %arg9[%18, %c0_i32_25] : memref<8x32xf32, #tpu.memory_space<vmem>> -> memref<1x32xf32, #tpu.memory_space<vmem>>
      %28 = tpu.memref_squeeze %27 : memref<1x32xf32, #tpu.memory_space<vmem>> -> memref<32xf32, #tpu.memory_space<vmem>>
      %29 = tpu.memref_slice %arg10[%c1_i32_23] : memref<2x!tpu.dma_semaphore, #tpu.memory_space<semaphore_mem>> -> memref<1x!tpu.dma_semaphore, #tpu.memory_space<semaphore_mem>>
      %30 = tpu.memref_squeeze %29 : memref<1x!tpu.dma_semaphore, #tpu.memory_space<semaphore_mem>> -> memref<!tpu.dma_semaphore, #tpu.memory_space<semaphore_mem>>
      tpu.wait_dma2 semaphore(%30 : memref<!tpu.dma_semaphore, #tpu.memory_space<semaphore_mem>>) src(%26 : memref<32xf32, #tpu.memory_space<any>>) dst(%28 : memref<32xf32, #tpu.memory_space<vmem>>)
    }
    %c8_i32_5 = arith.constant 8 : i32
    %c0 = arith.constant 0 : index
    %c0_6 = arith.constant 0 : index
    %3 = vector.load %arg8[%c0, %c0_6] : memref<8x32xf32, #tpu.memory_space<vmem>>, vector<8x32xf32>
    %c0_7 = arith.constant 0 : index
    %c0_8 = arith.constant 0 : index
    %4 = vector.load %arg5[%c0_7, %c0_8] : memref<1x32xf32, #tpu.memory_space<vmem>>, vector<1x32xf32>
    %5 = vector.broadcast %4 : vector<1x32xf32> to vector<8x32xf32>
    %6 = arith.mulf %3, %5 : vector<8x32xf32>
    %cst = arith.constant dense<0.000000e+00> : vector<8xf32>
    %7 = vector.multi_reduction <add>, %6, %cst [1] : vector<8x32xf32> to vector<8xf32>
    %8 = vector.shape_cast %7 : vector<8xf32> to vector<8x1xf32>
    %c0_9 = arith.constant 0 : index
    %c0_10 = arith.constant 0 : index
    %9 = vector.load %arg9[%c0_9, %c0_10] : memref<8x32xf32, #tpu.memory_space<vmem>>, vector<8x32xf32>
    %c0_11 = arith.constant 0 : index
    %c0_12 = arith.constant 0 : index
    %10 = vector.load %arg6[%c0_11, %c0_12] : memref<1x32xf32, #tpu.memory_space<vmem>>, vector<1x32xf32>
    %11 = vector.broadcast %10 : vector<1x32xf32> to vector<8x32xf32>
    %12 = arith.mulf %9, %11 : vector<8x32xf32>
    %cst_13 = arith.constant dense<0.000000e+00> : vector<8xf32>
    %13 = vector.multi_reduction <add>, %12, %cst_13 [1] : vector<8x32xf32> to vector<8xf32>
    %14 = vector.shape_cast %13 : vector<8xf32> to vector<8x1xf32>
    %15 = arith.addf %8, %14 : vector<8x1xf32>
    %c0_14 = arith.constant 0 : index
    %c0_15 = arith.constant 0 : index
    %16 = vector.load %arg7[%c0_14, %c0_15] : memref<8x1xf32, #tpu.memory_space<vmem>>, vector<8x1xf32>
    tpu.vector_store %arg7[%c0_14, %c0_15], %15 {strides = array<i32>} : memref<8x1xf32, #tpu.memory_space<vmem>>, vector<8x1xf32>,
    return
  }
  func.func @transform_2(%arg0: i32, %arg1: memref<24xi32, #tpu.memory_space<smem>>, %arg2: memref<24xi32, #tpu.memory_space<smem>>) -> (i32, i32) {
    %c0_i32 = arith.constant 0 : i32
    %c0_i32_0 = arith.constant 0 : i32
    %c0_i32_1 = arith.constant 0 : i32
    return %c0_i32, %c0_i32_0 : i32, i32
  }
  func.func @transform_3(%arg0: i32, %arg1: memref<24xi32, #tpu.memory_space<smem>>, %arg2: memref<24xi32, #tpu.memory_space<smem>>) -> (i32, i32) {
    %c0_i32 = arith.constant 0 : i32
    %c0_i32_0 = arith.constant 0 : i32
    %c0_i32_1 = arith.constant 0 : i32
    return %c0_i32, %c0_i32_0 : i32, i32
  }
  func.func @transform_4(%arg0: i32, %arg1: memref<24xi32, #tpu.memory_space<smem>>, %arg2: memref<24xi32, #tpu.memory_space<smem>>) -> (i32, i32) {
    %c0_i32 = arith.constant 0 : i32
    %c0_i32_0 = arith.constant 0 : i32
    return %arg0, %c0_i32 : i32, i32
  }
}

</mosaic_0001>

<llo_original>
// kernel: tpu_custom_call.1
$region0: #{tpu_custom_call.1}
  #allocation0 [shape = 'u32[]', space=smem, size = 0x4, offset = 0x4, fixed_abs, tag = 'smem constant byte address 0x4 - core index']
  #allocation1 [shape = 'u32[144,128]{1,0:T(1,128)}', space=vmem, size = 0x12000, scoped, tag = 'internal scratch']
  #allocation2 [shape = 'f32[8,32]{1,0:T(8,128)}', space=vmem, size = 0x1000, scoped, tag = 'scratch operand']
  #allocation3 [shape = 'f32[8,32]{1,0:T(8,128)}', space=vmem, size = 0x1000, scoped, tag = 'scratch operand']
  #allocation4 [shape = 's32[2]{0}', space=sflag, size = 0x8, scoped, tag = 'scratch operand']
  #allocation5 [shape = 's32[1]{0}', space=sflag, size = 0x4, scoped, tag = 'scoped memory for tpu_custom_call.1']
  #allocation6 [shape = 'u8[512]{0}', space=smem, size = 0x200, scoped, tag = 'prefetched SMEM operand 0']
  #allocation7 [shape = 'u8[512]{0}', space=smem, size = 0x200, scoped, tag = 'prefetched SMEM operand 1']
  #allocation8 [shape = 's32[]', space=sflag, size = 0x4, offset = 0, fixed_abs, tag = 'sflag constant byte address 0x0 - dummy sync flag']
  #allocation9 [shape = 's32[]', space=sflag, size = 0x4, offset = 0, fixed_abs, tag = 'sflag constant byte address 0x0 - dummy sync flag']
  %s0 = inlined_call_operand.vmem [shape: s32[24], index: 0, kind: input, shape index: {}]
  %s1 = inlined_call_operand.vmem [shape: s32[24], index: 1, kind: input, shape index: {}]
  %s2 = inlined_call_operand.vmem [shape: f32[50,32], index: 2, kind: input, shape index: {}]
  %s3 = inlined_call_operand.vmem [shape: f32[40,32], index: 3, kind: input, shape index: {}]
  %s4 = inlined_call_operand.vmem [shape: f32[1,32], index: 4, kind: input, shape index: {}]
  %s5 = inlined_call_operand.vmem [shape: f32[1,32], index: 5, kind: input, shape index: {}]
  %s6 = inlined_call_operand.vmem [shape: f32[24,1], index: 6, kind: output, shape index: {}]
  %s7 = sld [smem:[#allocation0]]
  $region115: #{tpu_custom_call.1} parent=0
    _
  %s9 = ssub.s32 1, %s7
  %s10 = scalar_select 0, %s9, %s7
  %s11 = sshll.u32 %s0, 4
  %s12 = int_to_ptr.vmem [resolvable:$true] %s11
  %14 = dma.vmem_to_smem %s12, 16, [#allocation6], [#allocation5]
  %s15 = sshll.u32 %s1, 4
  %s16 = int_to_ptr.vmem [resolvable:$true] %s15
  %18 = dma.vmem_to_smem %s16, 16, [#allocation7], [#allocation5]
  %19 = dma.done [#allocation5], 32
  %20 = sfence
  loop: start=0, step=1, limit=5
  $region2: #{tpu_custom_call.1} parent=0 // loop_pre_header
    _
  $region3: #{tpu_custom_call.1} parent=0 // loop_header
    %s22 = sphi 0, %s26
    %p23 = scmp.ge.s32.totalorder %s22, 5
    %s30 = sphi 0, %s30
    %s32 = sphi 0, %s30
    %s33 = sphi 0, %s32
    %s47 = sphi 0, %s33
    %s51 = sphi 0, %s51
    %s53 = sphi 0, %s51
    %s54 = sphi 0, %s53
    %s68 = sphi 0, %s54
    %s74 = sphi 0, %s76
    %s77 = sphi 0, %s74
    %s78 = sphi 0, %s77
    %s94 = sphi 0, %s78
  $region4: #{tpu_custom_call.1} parent=0 // loop_header_branch
    %25 = sbr.rel (%p23) target = $region8
  $region5: #{tpu_custom_call.1} parent=0 // loop_body
    %s27 = ssub.s32 %s22, 1
    %s28 = ssub.s32 %s22, 2
    %s29 = sadd.s32 %s22, 1
    %s31 = sadd.s32 %s30, 1
    %p34 = scmp.eq.s32.totalorder %s22, 2
    %p35 = scmp.ne.s32.totalorder %s30, %s32
    %p36 = scmp.eq.s32.totalorder %s22, 0
    %p37 = por %p35, %p36
    %p38 = scmp.ne.s32.totalorder %s30, %s32
    %p39 = scmp.eq.s32.totalorder %s27, 2
    %p40 = por %p38, %p39
    %p41 = scmp.ne.s32.totalorder %s32, %s33
    %p42 = scmp.eq.s32.totalorder %s27, 0
    %p43 = por %p41, %p42
    %p44 = scmp.ne.s32.totalorder %s32, %s33
    %p45 = scmp.eq.s32.totalorder %s28, 2
    %p46 = por %p44, %p45
    %p48 = scmp.ne.s32.totalorder %s33, %s47
    %p49 = scmp.eq.s32.totalorder %s28, 0
    %p50 = por %p48, %p49
    %s52 = sadd.s32 %s51, 1
    %p55 = scmp.eq.s32.totalorder %s22, 2
    %p56 = scmp.ne.s32.totalorder %s51, %s53
    %p57 = scmp.eq.s32.totalorder %s22, 0
    %p58 = por %p56, %p57
    %p59 = scmp.ne.s32.totalorder %s51, %s53
    %p60 = scmp.eq.s32.totalorder %s27, 2
    %p61 = por %p59, %p60
    %p62 = scmp.ne.s32.totalorder %s53, %s54
    %p63 = scmp.eq.s32.totalorder %s27, 0
    %p64 = por %p62, %p63
    %p65 = scmp.ne.s32.totalorder %s53, %s54
    %p66 = scmp.eq.s32.totalorder %s28, 2
    %p67 = por %p65, %p66
    %p69 = scmp.ne.s32.totalorder %s54, %s68
    %p70 = scmp.eq.s32.totalorder %s28, 0
    %p71 = por %p69, %p70
    %s72 = ssub.s32 %s22, %s29
    %p73 = scmp.eq.s32.totalorder %s72, 0
    %s75 = sadd.s32 %s74, 1
    %s76 = scalar_select %p73, %s74, %s75
    %p79 = pneg %p73
    %p80 = scmp.eq.s32.totalorder %s22, 2
    %p81 = por %p79, %p80
    %p82 = scmp.ne.s32.totalorder %s74, %s77
    %p83 = scmp.eq.s32.totalorder %s22, 0
    %p84 = por %p82, %p83
    %p85 = scmp.ne.s32.totalorder %s74, %s77
    %p86 = scmp.eq.s32.totalorder %s27, 2
    %p87 = por %p85, %p86
    %p88 = scmp.ne.s32.totalorder %s77, %s78
    %p89 = scmp.eq.s32.totalorder %s27, 0
    %p90 = por %p88, %p89
    %p91 = scmp.ne.s32.totalorder %s77, %s78
    %p92 = scmp.eq.s32.totalorder %s28, 2
    %p93 = por %p91, %p92
    %p95 = scmp.ne.s32.totalorder %s78, %s94
    %p96 = scmp.eq.s32.totalorder %s28, 0
    %p97 = por %p95, %p96
    %p98 = scmp.le.s32.totalorder 1, %s22
    %p99 = scmp.lt.s32.totalorder %s22, 4
    %p100 = pnand %p98, %p99
    %p101 = pneg %p100
    // Predicated region
    $region9: #{tpu_custom_call.1} parent=5 // pred_check
      _
    $region10: #{tpu_custom_call.1} parent=5 // pred_check_branch
      %103 = sbr.rel (%p100) target = $region12
    $region11: #{tpu_custom_call.1} parent=5 // pred_region
      %s104 = ssub.s32 %s22, 1
      // Predicated region
      $region13: #{tpu_custom_call.1} parent=11 // pred_check
        %p105 = pneg %p43
      $region14: #{tpu_custom_call.1} parent=11 // pred_check_branch
        %107 = sbr.rel (%p105) target = $region16
      $region15: #{tpu_custom_call.1} parent=11 // pred_region
        _
      $region16: #{tpu_custom_call.1} parent=11 // pred_fallthru
        _
      // Predicated region
      $region17: #{tpu_custom_call.1} parent=11 // pred_check
        %p108 = pneg %p64
      $region18: #{tpu_custom_call.1} parent=11 // pred_check_branch
        %110 = sbr.rel (%p108) target = $region20
      $region19: #{tpu_custom_call.1} parent=11 // pred_region
        _
      $region20: #{tpu_custom_call.1} parent=11 // pred_fallthru
        _
    $region12: #{tpu_custom_call.1} parent=5 // pred_fallthru
      _
    %p111 = scmp.lt.s32.totalorder %s22, 3
    // Predicated region
    $region21: #{tpu_custom_call.1} parent=5 // pred_check
      %p112 = pneg %p111
    $region22: #{tpu_custom_call.1} parent=5 // pred_check_branch
      %114 = sbr.rel (%p112) target = $region24
    $region23: #{tpu_custom_call.1} parent=5 // pred_region
      _
    $region24: #{tpu_custom_call.1} parent=5 // pred_fallthru
      _
    %p115 = scmp.le.s32.totalorder 1, %s22
    %p116 = scmp.lt.s32.totalorder %s22, 4
    %p117 = pnand %p115, %p116
    %p118 = pneg %p117
    // Predicated region
    $region25: #{tpu_custom_call.1} parent=5 // pred_check
      _
    $region26: #{tpu_custom_call.1} parent=5 // pred_check_branch
      %120 = sbr.rel (%p117) target = $region28
    $region27: #{tpu_custom_call.1} parent=5 // pred_region
      %s121 = ssub.s32 %s22, 1
      %p122 = pneg %p43
      %p123 = pneg %p40
      %p124 = pneg %p64
      %p125 = pneg %p61
      %p126 = pneg %p90
      %p127 = pneg %p87
      %p128 = scmp.lt.s32.totalorder %s27, 2
      %s129 = scalar_select %p128, %s27, 2
      %s130 = smul.addr %s129, 8
      %s131 = scalar_lea.vmem %s6, %s130
      %p132 = scmp.lt.s32.totalorder %s27, 2
      %s133 = scalar_select %p132, %s27, 2
      %s134 = smul.addr %s133, 8
      %s135 = scalar_lea.vmem %s6, %s134
      %s136 = smul.u32 %s27, 8
      loop: start=0, step=1, limit=8
      $region29: #{tpu_custom_call.1} parent=27 // loop_pre_header
        _
      $region30: #{tpu_custom_call.1} parent=27 // loop_header
        %s138 = sphi 0, %s142
        %p139 = scmp.ge.s32.totalorder %s138, 8
      $region31: #{tpu_custom_call.1} parent=27 // loop_header_branch
        %141 = sbr.rel (%p139) target = $region35
      $region32: #{tpu_custom_call.1} parent=27 // loop_body
        %s143 = sadd.s32 %s136, %s138
        %s144 = sld [smem:[#allocation6 + %s143]]
        %s145 = scalar_lea.vmem %s2, %s144
        %s146 = scalar_lea.vmem [#allocation2], %s138
        %p148 = scmp.lt.u32.totalorder 1, 8
        %p149 = pneg %p148
        // Predicated region
        $region36: #{tpu_custom_call.1} parent=32 // pred_check
          _
        $region37: #{tpu_custom_call.1} parent=32 // pred_check_branch
          %151 = sbr.rel (%p148) target = $region39
        $region38: #{tpu_custom_call.1} parent=32 // pred_region
          %s167 = sand.u32 1, 7
          %p168 = scmp.eq.s32.totalorder %s167, 0
          %p169 = pneg %p168
          // Predicated region
          $region51: #{tpu_custom_call.1} parent=38 // pred_check
            _
          $region52: #{tpu_custom_call.1} parent=38 // pred_check_branch
            %171 = sbr.rel (%p168) target = $region54
          $region53: #{tpu_custom_call.1} parent=38 // pred_region
            %s172 = sand.u32 1, 7
            %s173 = ssub.s32 1, %s172
            %s174 = scalar_lea.vmem %s145, %s173
            %s175 = ssub.s32 1, %s172
            %s176 = scalar_lea.vmem %s146, %s175 [#allocation2]
            %s177 = sshll.u32 1, %s172
            %s178 = ssub.s32 %s177, 1
            loop: start=0, step=1, limit=1
            $region55: #{tpu_custom_call.1} parent=53 // loop_pre_header
              _
            $region56: #{tpu_custom_call.1} parent=53 // loop_header
              %s180 = sphi 0, %s184
              %p181 = scmp.ge.s32.totalorder %s180, 1
              %s185 = sphi %s174, %s174
              %s186 = sphi %s176, %s176
            $region57: #{tpu_custom_call.1} parent=53 // loop_header_branch
              %183 = sbr.rel (%p181) target = $region61
            $region58: #{tpu_custom_call.1} parent=53 // loop_body
              %v187 = vld [vmem:[%s185] sm:%s178]
              %188 = vst [vmem:[%s186] sm:%s178] %v187
            $region59: #{tpu_custom_call.1} parent=53 // loop_footer
              %s184 = sadd.s32 1, %s180
            $region60: #{tpu_custom_call.1} parent=53 // loop_footer_branch
              %179 = sbr.rel target = $region56
            $region61: #{tpu_custom_call.1} parent=53 // loop_exit
              _
          $region54: #{tpu_custom_call.1} parent=38 // pred_fallthru
            _
        $region39: #{tpu_custom_call.1} parent=32 // pred_fallthru
          _
        // Predicated region
        $region40: #{tpu_custom_call.1} parent=32 // pred_check
          %p152 = pneg %p148
        $region41: #{tpu_custom_call.1} parent=32 // pred_check_branch
          %154 = sbr.rel (%p152) target = $region43
        $region42: #{tpu_custom_call.1} parent=32 // pred_region
          %s155 = sshll.u32 1, 1
          %s156 = ssub.s32 %s155, 1
          loop: start=0, step=1, limit=1
          $region44: #{tpu_custom_call.1} parent=42 // loop_pre_header
            _
          $region45: #{tpu_custom_call.1} parent=42 // loop_header
            %s158 = sphi 0, %s162
            %p159 = scmp.ge.s32.totalorder %s158, 1
            %s163 = sphi %s145, %s145
            %s164 = sphi %s146, %s146
          $region46: #{tpu_custom_call.1} parent=42 // loop_header_branch
            %161 = sbr.rel (%p159) target = $region50
          $region47: #{tpu_custom_call.1} parent=42 // loop_body
            %v165 = vld [vmem:[%s163] sm:%s156]
            %166 = vst [vmem:[%s164] sm:%s156] %v165
          $region48: #{tpu_custom_call.1} parent=42 // loop_footer
            %s162 = sadd.s32 1, %s158
          $region49: #{tpu_custom_call.1} parent=42 // loop_footer_branch
            %157 = sbr.rel target = $region45
          $region50: #{tpu_custom_call.1} parent=42 // loop_exit
            _
        $region43: #{tpu_custom_call.1} parent=32 // pred_fallthru
          _
        // Predicated region
        $region62: #{tpu_custom_call.1} parent=32 // pred_check
          _
        $region63: #{tpu_custom_call.1} parent=32 // pred_check_branch
          %191 = sbr.rel (0) target = $region65
        $region64: #{tpu_custom_call.1} parent=32 // pred_region
          %192 = vsyncadd [#allocation4], 16
        $region65: #{tpu_custom_call.1} parent=32 // pred_fallthru
          _
        %s193 = sld [smem:[#allocation7 + %s143]]
        %s194 = scalar_lea.vmem %s3, %s193
        %s195 = scalar_lea.vmem [#allocation3], %s138
        %s196 = scalar_lea.sflag [#allocation4], 1
        %p198 = scmp.lt.u32.totalorder 1, 8
        %p199 = pneg %p198
        // Predicated region
        $region66: #{tpu_custom_call.1} parent=32 // pred_check
          _
        $region67: #{tpu_custom_call.1} parent=32 // pred_check_branch
          %201 = sbr.rel (%p198) target = $region69
        $region68: #{tpu_custom_call.1} parent=32 // pred_region
          %s217 = sand.u32 1, 7
          %p218 = scmp.eq.s32.totalorder %s217, 0
          %p219 = pneg %p218
          // Predicated region
          $region81: #{tpu_custom_call.1} parent=68 // pred_check
            _
          $region82: #{tpu_custom_call.1} parent=68 // pred_check_branch
            %221 = sbr.rel (%p218) target = $region84
          $region83: #{tpu_custom_call.1} parent=68 // pred_region
            %s222 = sand.u32 1, 7
            %s223 = ssub.s32 1, %s222
            %s224 = scalar_lea.vmem %s194, %s223
            %s225 = ssub.s32 1, %s222
            %s226 = scalar_lea.vmem %s195, %s225 [#allocation3]
            %s227 = sshll.u32 1, %s222
            %s228 = ssub.s32 %s227, 1
            loop: start=0, step=1, limit=1
            $region85: #{tpu_custom_call.1} parent=83 // loop_pre_header
              _
            $region86: #{tpu_custom_call.1} parent=83 // loop_header
              %s230 = sphi 0, %s234
              %p231 = scmp.ge.s32.totalorder %s230, 1
              %s235 = sphi %s224, %s224
              %s236 = sphi %s226, %s226
            $region87: #{tpu_custom_call.1} parent=83 // loop_header_branch
              %233 = sbr.rel (%p231) target = $region91
            $region88: #{tpu_custom_call.1} parent=83 // loop_body
              %v237 = vld [vmem:[%s235] sm:%s228]
              %238 = vst [vmem:[%s236] sm:%s228] %v237
            $region89: #{tpu_custom_call.1} parent=83 // loop_footer
              %s234 = sadd.s32 1, %s230
            $region90: #{tpu_custom_call.1} parent=83 // loop_footer_branch
              %229 = sbr.rel target = $region86
            $region91: #{tpu_custom_call.1} parent=83 // loop_exit
              _
          $region84: #{tpu_custom_call.1} parent=68 // pred_fallthru
            _
        $region69: #{tpu_custom_call.1} parent=32 // pred_fallthru
          _
        // Predicated region
        $region70: #{tpu_custom_call.1} parent=32 // pred_check
          %p202 = pneg %p198
        $region71: #{tpu_custom_call.1} parent=32 // pred_check_branch
          %204 = sbr.rel (%p202) target = $region73
        $region72: #{tpu_custom_call.1} parent=32 // pred_region
          %s205 = sshll.u32 1, 1
          %s206 = ssub.s32 %s205, 1
          loop: start=0, step=1, limit=1
          $region74: #{tpu_custom_call.1} parent=72 // loop_pre_header
            _
          $region75: #{tpu_custom_call.1} parent=72 // loop_header
            %s208 = sphi 0, %s212
            %p209 = scmp.ge.s32.totalorder %s208, 1
            %s213 = sphi %s194, %s194
            %s214 = sphi %s195, %s195
          $region76: #{tpu_custom_call.1} parent=72 // loop_header_branch
            %211 = sbr.rel (%p209) target = $region80
          $region77: #{tpu_custom_call.1} parent=72 // loop_body
            %v215 = vld [vmem:[%s213] sm:%s206]
            %216 = vst [vmem:[%s214] sm:%s206] %v215
          $region78: #{tpu_custom_call.1} parent=72 // loop_footer
            %s212 = sadd.s32 1, %s208
          $region79: #{tpu_custom_call.1} parent=72 // loop_footer_branch
            %207 = sbr.rel target = $region75
          $region80: #{tpu_custom_call.1} parent=72 // loop_exit
            _
        $region73: #{tpu_custom_call.1} parent=32 // pred_fallthru
          _
        // Predicated region
        $region92: #{tpu_custom_call.1} parent=32 // pred_check
          _
        $region93: #{tpu_custom_call.1} parent=32 // pred_check_branch
          %241 = sbr.rel (0) target = $region95
        $region94: #{tpu_custom_call.1} parent=32 // pred_region
          %242 = vsyncadd %s196, 16
        $region95: #{tpu_custom_call.1} parent=32 // pred_fallthru
          _
      $region33: #{tpu_custom_call.1} parent=27 // loop_footer
        %s142 = sadd.s32 1, %s138
      $region34: #{tpu_custom_call.1} parent=27 // loop_footer_branch
        %137 = sbr.rel target = $region30
      $region35: #{tpu_custom_call.1} parent=27 // loop_exit
        _
      loop: start=0, step=1, limit=8
      $region96: #{tpu_custom_call.1} parent=27 // loop_pre_header
        _
      $region97: #{tpu_custom_call.1} parent=27 // loop_header
        %s244 = sphi 0, %s248
        %p245 = scmp.ge.s32.totalorder %s244, 8
      $region98: #{tpu_custom_call.1} parent=27 // loop_header_branch
        %247 = sbr.rel (%p245) target = $region102
      $region99: #{tpu_custom_call.1} parent=27 // loop_body
        %250 = dma.done [#allocation4], 16
        %s251 = scalar_lea.sflag [#allocation4], 1
        %253 = dma.done %s251, 16
      $region100: #{tpu_custom_call.1} parent=27 // loop_footer
        %s248 = sadd.s32 1, %s244
      $region101: #{tpu_custom_call.1} parent=27 // loop_footer_branch
        %243 = sbr.rel target = $region97
      $region102: #{tpu_custom_call.1} parent=27 // loop_exit
        _
      %v254 = vld [vmem:[#allocation2] sm:$0xff]
      %v255 = vld [vmem:[%s4] sm:$0x1]
      %v257 = vlaneseq
      %v258 = vshrl.u32 %v257, 7
      %v259 = vsub.s32 0, %v258
      %v260 = vrot.slane %v255, %v259
      %v262 = vmul.f32 %v254, %v260
      %vm263 = vcmask 261120
      %v264 = vsel %vm263, %v262, 0.0
      %265 = vadd.xlane.f32.xlu0 %v264
      %v266 = vpop.xlane.xlu0 %265
      %v267 = vld [vmem:[#allocation3] sm:$0xff]
      %v268 = vld [vmem:[%s5] sm:$0x1]
      %v270 = vlaneseq
      %v271 = vshrl.u32 %v270, 7
      %v272 = vsub.s32 0, %v271
      %v273 = vrot.slane %v268, %v272
      %v275 = vmul.f32 %v267, %v273
      %v276 = vsel %vm263, %v275, 0.0
      %277 = vadd.xlane.f32.xlu0 %v276
      %v278 = vpop.xlane.xlu0 %277
      %v279 = vadd.f32 %v266, %v278
      %vm280 = vcmask 7168
      %281 = vst.msk [vmem:[%s135] sm:$0xff] %vm280, %v279
      %p282 = scmp.lt.s32.totalorder %s27, 2
      %s283 = scalar_select %p282, %s27, 2
      %s284 = smul.addr %s283, 8
      %s285 = scalar_lea.vmem %s6, %s284
      // Predicated region
      $region103: #{tpu_custom_call.1} parent=27 // pred_check
        %p286 = pneg %p87
      $region104: #{tpu_custom_call.1} parent=27 // pred_check_branch
        %288 = sbr.rel (%p286) target = $region106
      $region105: #{tpu_custom_call.1} parent=27 // pred_region
        _
      $region106: #{tpu_custom_call.1} parent=27 // pred_fallthru
        _
    $region28: #{tpu_custom_call.1} parent=5 // pred_fallthru
      _
    %p289 = scmp.le.s32.totalorder 2, %s22
    // Predicated region
    $region107: #{tpu_custom_call.1} parent=5 // pred_check
      %p290 = pneg %p289
    $region108: #{tpu_custom_call.1} parent=5 // pred_check_branch
      %292 = sbr.rel (%p290) target = $region110
    $region109: #{tpu_custom_call.1} parent=5 // pred_region
      %s293 = ssub.s32 %s22, 2
      // Predicated region
      $region111: #{tpu_custom_call.1} parent=109 // pred_check
        %p294 = pneg %p93
      $region112: #{tpu_custom_call.1} parent=109 // pred_check_branch
        %296 = sbr.rel (%p294) target = $region114
      $region113: #{tpu_custom_call.1} parent=109 // pred_region
        %p297 = scmp.lt.s32.totalorder %s28, 2
        %s298 = scalar_select %p297, %s28, 2
        %s299 = smul.addr %s298, 8
        %s300 = scalar_lea.vmem %s6, %s299
      $region114: #{tpu_custom_call.1} parent=109 // pred_fallthru
        _
    $region110: #{tpu_custom_call.1} parent=5 // pred_fallthru
      _
  $region6: #{tpu_custom_call.1} parent=0 // loop_footer
    %s26 = sadd.s32 1, %s22
  $region7: #{tpu_custom_call.1} parent=0 // loop_footer_branch
    %21 = sbr.rel target = $region3
  $region8: #{tpu_custom_call.1} parent=0 // loop_exit
    _
  %301 = vsyncmov [#allocation4]
  %s302 = vpop.sfrf %301
  %p303 = scmp.eq.s32.totalorder %s302, 0
  %p304 = pneg %p303
  %306 = shalt.err (%p304)
  %s307 = scalar_lea.sflag [#allocation4], 1
  %308 = vsyncmov %s307
  %s309 = vpop.sfrf %308
  %p310 = scmp.eq.s32.totalorder %s309, 0
  %p311 = pneg %p310
  %313 = shalt.err (%p311)

</llo_original>
